<compile_context>
chip_gen: v7x
topology: tpu7x:2x2x1
jax: 0.10.0
libtpu: 0.0.40
codegen_flags: <defaults>
</compile_context>

<pallas_src>
import math

import jax
import jax.numpy as jnp
from jax.experimental import pallas as pl
from jax.experimental.pallas import tpu as pltpu


# ----------------------------------------------------------------------------
# Pallas kernels
# ----------------------------------------------------------------------------

def _enc_in_kernel(x_ref, w_ref, b_ref, g_ref, beta_ref, o_ref):
    """Fused input projection + LayerNorm: LN((x @ W) + b). Output bf16."""
    x = x_ref[...].astype(jnp.bfloat16)
    y = jnp.dot(x, w_ref[...], preferred_element_type=jnp.float32) + b_ref[...]
    mu = jnp.mean(y, axis=-1, keepdims=True)
    var = jnp.mean((y - mu) ** 2, axis=-1, keepdims=True)
    out = (y - mu) * jax.lax.rsqrt(var + 1e-5) * g_ref[...] + beta_ref[...]
    o_ref[...] = out.astype(o_ref.dtype)


def _make_layer_kernel(G, T, D, n_heads, causal, mask_delay):
    """Whole post-LN TransformerEncoderLayer (eval mode), G sequences packed."""
    Dh = D // n_heads

    def kern(x_ref, wqkv_ref, bqkv_ref, wo_ref, bo_ref,
             ln1g_ref, ln1b_ref, w1_ref, b1_ref, w2_ref, b2_ref,
             ln2g_ref, ln2b_ref, o_ref):
        xb = x_ref[...].astype(jnp.bfloat16)                  # (G, T, D)
        x2 = xb.reshape(G * T, D)
        xf = x2.astype(jnp.float32)

        # Fused QKV projection with M = G*T folded rows (attention scale is
        # already folded into the Q columns of wqkv/bqkv).
        qkv = jnp.dot(x2, wqkv_ref[...],
                      preferred_element_type=jnp.float32) + bqkv_ref[...]
        qkv = qkv.reshape(G, T, 3 * D)
        q = qkv[:, :, :D].astype(jnp.bfloat16)
        k = qkv[:, :, D:2 * D].astype(jnp.bfloat16)
        v = qkv[:, :, 2 * D:].astype(jnp.bfloat16)

        if causal:
            ii = jax.lax.broadcasted_iota(jnp.int32, (T, T), 0)
            jj = jax.lax.broadcasted_iota(jnp.int32, (T, T), 1)
            allow = jj <= ii + mask_delay                     # diag always allowed

        heads = []
        for h in range(n_heads):                              # unrolled (small)
            qh = q[:, :, h * Dh:(h + 1) * Dh]
            kh = k[:, :, h * Dh:(h + 1) * Dh]
            vh = v[:, :, h * Dh:(h + 1) * Dh]
            s = jnp.einsum('gqd,gkd->gqk', qh, kh,
                           preferred_element_type=jnp.float32)
            if causal:                    # encoder path skips the mask entirely
                s = jnp.where(allow[None, :, :], s, -jnp.inf)
            s = s - jnp.max(s, axis=-1, keepdims=True)
            p = jnp.exp(s)
            p = p * pl.reciprocal(jnp.sum(p, axis=-1, keepdims=True), approx=True)
            heads.append(jnp.einsum('gqk,gkd->gqd', p.astype(jnp.bfloat16), vh,
                                    preferred_element_type=jnp.float32))
        # Single full-depth output projection (no per-head K=Dh matmuls).
        cat = jnp.concatenate(heads, axis=-1).reshape(G * T, D)
        attn = jnp.dot(cat.astype(jnp.bfloat16), wo_ref[...],
                       preferred_element_type=jnp.float32) + bo_ref[...]

        # Residual + LayerNorm1 (f32).
        y = xf + attn
        mu = jnp.mean(y, axis=-1, keepdims=True)
        var = jnp.mean((y - mu) ** 2, axis=-1, keepdims=True)
        y = (y - mu) * jax.lax.rsqrt(var + 1e-5) * ln1g_ref[...] + ln1b_ref[...]

        # Feed-forward: the (G*T, dim_ff) intermediate never leaves VMEM.
        h1 = jnp.dot(y.astype(jnp.bfloat16), w1_ref[...],
                     preferred_element_type=jnp.float32) + b1_ref[...]
        h1 = jnp.maximum(h1, 0.0)
        h2 = jnp.dot(h1.astype(jnp.bfloat16), w2_ref[...],
                     preferred_element_type=jnp.float32) + b2_ref[...]

        # Residual + LayerNorm2 (f32), emit bf16.
        z = y + h2
        mu = jnp.mean(z, axis=-1, keepdims=True)
        var = jnp.mean((z - mu) ** 2, axis=-1, keepdims=True)
        z = (z - mu) * jax.lax.rsqrt(var + 1e-5) * ln2g_ref[...] + ln2b_ref[...]
        o_ref[...] = z.reshape(G, T, D).astype(o_ref.dtype)

    return kern


def _make_conv_kernel(K, Tout):
    """Conv1d as K accumulated shifted matmuls (im2col done in VMEM), fused
    with the L2-normalize epilogue and the decoder-init projection."""
    def kern(x_ref, w_ref, b_ref, wt_ref, e_ref, p_ref):
        x = x_ref[0]                                          # (Tp, D) bf16
        D = x.shape[-1]
        acc = jnp.zeros((Tout, D), jnp.float32)
        for k in range(K):                                    # unrolled
            acc = acc + jnp.dot(x[k:k + Tout, :], w_ref[k],
                                preferred_element_type=jnp.float32)
        y = acc + b_ref[...]
        inv = jax.lax.rsqrt(jnp.sum(y * y, axis=-1, keepdims=True) + 1e-12)
        e = y * inv
        e_ref[0] = e
        p_ref[0] = jnp.dot(e.astype(jnp.bfloat16), wt_ref[...],
                           preferred_element_type=jnp.float32)
    return kern


def _attr_norm_scores_kernel(a_ref, e_ref, an_ref, sc_ref):
    """L2-normalize attractors over D fused with the emb·attractor scores."""
    a = a_ref[0].astype(jnp.float32)                          # (S, T, D)
    e = e_ref[0]                                              # (T, D) f32
    inv = jax.lax.rsqrt(jnp.sum(a * a, axis=-1, keepdims=True) + 1e-12)
    an = a * inv
    an_ref[0] = an
    sc_ref[0] = jnp.sum(an * e[None, :, :], axis=-1)          # (S, T)


def _make_consis_kernel(S):
    """Cosine-similarity maps + squared-diff sum, accumulated over the B grid."""
    def kern(e_ref, t_ref, o_ref):
        @pl.when(pl.program_id(0) == 0)
        def _():
            o_ref[...] = jnp.zeros_like(o_ref)

        e = e_ref[0]                                          # (T, D) f32
        eb = e.astype(jnp.bfloat16)
        g = jax.lax.dot_general(eb, eb, (((1,), (1,)), ((), ())),
                                preferred_element_type=jnp.float32)
        n = jnp.sqrt(jnp.sum(e * e, axis=-1, keepdims=True))
        am = g / (n * n.T + 1e-6)

        t = t_ref[0]                                          # (T, S) f32
        tt = t.T                                              # (S, T)
        gl = jnp.zeros_like(g)
        for s in range(S):                                    # VPU outer products
            gl = gl + t[:, s:s + 1] * tt[s:s + 1, :]
        nl = jnp.sqrt(jnp.sum(t * t, axis=-1, keepdims=True))
        lm = gl / (nl * nl.T + 1e-6)

        d = am - lm
        part = jnp.sum(jnp.sum(d * d, axis=1, keepdims=True), axis=0, keepdims=True)
        o_ref[...] = o_ref[...] + part
    return kern


# ----------------------------------------------------------------------------
# pallas_call wrappers
# ----------------------------------------------------------------------------

def _pick_group(brows, max_g=8):
    """Largest divisor G <= max_g of brows that still leaves >= 2 grid steps."""
    best = 1
    for g in range(1, min(max_g, brows) + 1):
        if brows % g == 0 and brows // g >= 2:
            best = g
    return max(best, 1)


def encoder_input_proj(x2d, w_bf16, b, g, beta):
    """Row-tiled Linear + LayerNorm; emits bf16 activations."""
    N0, F = x2d.shape
    D = w_bf16.shape[1]
    tile = N0 if N0 <= 512 else 512
    padN = (-N0) % tile
    if padN:
        x2d = jnp.pad(x2d, ((0, padN), (0, 0)))
    N = N0 + padN
    const = lambda i: (0, 0)
    out = pl.pallas_call(
        _enc_in_kernel,
        out_shape=jax.ShapeDtypeStruct((N, D), jnp.bfloat16),
        grid=(N // tile,),
        in_specs=[pl.BlockSpec((tile, F), lambda i: (i, 0)),
                  pl.BlockSpec((F, D), const),
                  pl.BlockSpec((1, D), const),
                  pl.BlockSpec((1, D), const),
                  pl.BlockSpec((1, D), const)],
        out_specs=pl.BlockSpec((tile, D), lambda i: (i, 0)),
        compiler_params=pltpu.CompilerParams(dimension_semantics=("parallel",)),
    )(x2d, w_bf16, b, g, beta)
    return out[:N0]


def transformer_layer(x, lp, n_heads, causal=False, mask_delay=0):
    Brows, T, D = x.shape
    ff = lp['ff1_w'].shape[1]
    G = _pick_group(Brows)
    const = lambda i: (0, 0)

    # Rough VMEM working-set estimate; raise the scoped limit only if needed.
    est = (2 * 2 * (G * T * D) * 2
           + 2 * 2 * (3 * D * D + D * D + 2 * D * ff)
           + 4 * (G * T * 3 * D + G * T * T + G * T * ff + 2 * G * T * D))
    cp = dict(dimension_semantics=("parallel",))
    if est > 32 * 1024 * 1024:
        cp['vmem_limit_bytes'] = min(int(est * 3 // 2), 100 * 1024 * 1024)

    return pl.pallas_call(
        _make_layer_kernel(G, T, D, n_heads, causal, mask_delay),
        out_shape=jax.ShapeDtypeStruct((Brows, T, D), jnp.bfloat16),
        grid=(Brows // G,),
        in_specs=[
            pl.BlockSpec((G, T, D), lambda i: (i, 0, 0)),
            pl.BlockSpec((D, 3 * D), const),
            pl.BlockSpec((1, 3 * D), const),
            pl.BlockSpec((D, D), const),
            pl.BlockSpec((1, D), const),
            pl.BlockSpec((1, D), const),
            pl.BlockSpec((1, D), const),
            pl.BlockSpec((D, ff), const),
            pl.BlockSpec((1, ff), const),
            pl.BlockSpec((ff, D), const),
            pl.BlockSpec((1, D), const),
            pl.BlockSpec((1, D), const),
            pl.BlockSpec((1, D), const),
        ],
        out_specs=pl.BlockSpec((G, T, D), lambda i: (i, 0, 0)),
        compiler_params=pltpu.CompilerParams(**cp),
    )(x, lp['wqkv'], lp['bqkv'], lp['wo'], lp['bo'],
      lp['ln1_g'], lp['ln1_b'], lp['ff1_w'], lp['ff1_b'],
      lp['ff2_w'], lp['ff2_b'], lp['ln2_g'], lp['ln2_b'])


def conv_l2_proj(xp, w_kdd, b, w_top, Tout):
    """Per-batch Conv1d + L2-normalize + decoder-init projection."""
    B, Tp, D = xp.shape
    K = w_kdd.shape[0]
    return pl.pallas_call(
        _make_conv_kernel(K, Tout),
        out_shape=(jax.ShapeDtypeStruct((B, Tout, D), jnp.float32),
                   jax.ShapeDtypeStruct((B, Tout, D), jnp.float32)),
        grid=(B,),
        in_specs=[pl.BlockSpec((1, Tp, D), lambda i: (i, 0, 0)),
                  pl.BlockSpec((K, D, D), lambda i: (0, 0, 0)),
                  pl.BlockSpec((1, D), lambda i: (0, 0)),
                  pl.BlockSpec((D, D), lambda i: (0, 0))],
        out_specs=(pl.BlockSpec((1, Tout, D), lambda i: (i, 0, 0)),
                   pl.BlockSpec((1, Tout, D), lambda i: (i, 0, 0))),
        compiler_params=pltpu.CompilerParams(dimension_semantics=("parallel",)),
    )(xp, w_kdd, b.reshape(1, D), w_top)


def attractor_norm_scores(attr, emb):
    B, S, T, D = attr.shape
    return pl.pallas_call(
        _attr_norm_scores_kernel,
        out_shape=(jax.ShapeDtypeStruct((B, S, T, D), jnp.float32),
                   jax.ShapeDtypeStruct((B, S, T), jnp.float32)),
        grid=(B,),
        in_specs=[pl.BlockSpec((1, S, T, D), lambda i: (i, 0, 0, 0)),
                  pl.BlockSpec((1, T, D), lambda i: (i, 0, 0))],
        out_specs=(pl.BlockSpec((1, S, T, D), lambda i: (i, 0, 0, 0)),
                   pl.BlockSpec((1, S, T), lambda i: (i, 0, 0))),
        compiler_params=pltpu.CompilerParams(dimension_semantics=("parallel",)),
    )(attr, emb)


def consis_loss_sum(emb, tgt_pad):
    B, T, D = emb.shape
    S = tgt_pad.shape[-1]
    return pl.pallas_call(
        _make_consis_kernel(S),
        out_shape=jax.ShapeDtypeStruct((1, 1), jnp.float32),
        grid=(B,),
        in_specs=[pl.BlockSpec((1, T, D), lambda b: (b, 0, 0)),
                  pl.BlockSpec((1, T, S), lambda b: (b, 0, 0))],
        out_specs=pl.BlockSpec((1, 1), lambda b: (0, 0)),
        compiler_params=pltpu.CompilerParams(dimension_semantics=("arbitrary",)),
    )(emb, tgt_pad)


# ----------------------------------------------------------------------------
# Parameter preparation (bf16 copies / scale folds done ONCE)
# ----------------------------------------------------------------------------

def prepare_params(params, cfg):
    D = cfg['n_units']
    Dh = D // cfg['n_heads']
    attn_scale = 1.0 / math.sqrt(Dh)
    # BatchNorm1d eval (default running stats) == scale by 1/sqrt(1+eps);
    # applied to raw features before the Linear, so fold into the weight only.
    bn_scale = 1.0 / math.sqrt(1.0 + 1e-5)

    def prep_layer(lp):
        ff = lp['ff1_w'].shape[1]
        wqkv = lp['wqkv'].at[:, :D].multiply(attn_scale)     # fold 1/sqrt(Dh) into Q
        bqkv = lp['bqkv'].at[:D].multiply(attn_scale)
        return dict(
            wqkv=wqkv.astype(jnp.bfloat16),
            bqkv=bqkv.reshape(1, 3 * D),
            wo=lp['wo'].astype(jnp.bfloat16),
            bo=lp['bo'].reshape(1, D),
            ln1_g=lp['ln1_g'].reshape(1, D), ln1_b=lp['ln1_b'].reshape(1, D),
            ff1_w=lp['ff1_w'].astype(jnp.bfloat16), ff1_b=lp['ff1_b'].reshape(1, ff),
            ff2_w=lp['ff2_w'].astype(jnp.bfloat16), ff2_b=lp['ff2_b'].reshape(1, D),
            ln2_g=lp['ln2_g'].reshape(1, D), ln2_b=lp['ln2_b'].reshape(1, D),
        )

    enc, dec = params['enc'], params['dec']
    return dict(
        enc_w=(enc['enc_w'] * bn_scale).astype(jnp.bfloat16),
        enc_b=enc['enc_b'].reshape(1, D),
        enc_ln_g=enc['enc_ln_g'].reshape(1, D),
        enc_ln_b=enc['enc_ln_b'].reshape(1, D),
        enc_layers=[prep_layer(lp) for lp in enc['layers']],
        dec_layers=[prep_layer(lp) for lp in dec['layers']],
        conv_w=params['conv_w'].astype(jnp.bfloat16),
        conv_b=params['conv_b'],
        convert_w_top=dec['convert_w'][:D].astype(jnp.bfloat16),
        convert_w_bot=dec['convert_w'][D:],
        convert_b=dec['convert_b'],
    )


# ----------------------------------------------------------------------------
# Model glue (ragged-batch marshalling)
# ----------------------------------------------------------------------------

def positional_encoding(S, D):
    pos = jnp.arange(S, dtype=jnp.float32)[:, None]
    div = jnp.exp(jnp.arange(0, D, 2, dtype=jnp.float32) * (-math.log(10000.0) / D))
    pe = jnp.zeros((S, D), jnp.float32)
    pe = pe.at[:, 0::2].set(jnp.sin(pos * div))
    pe = pe.at[:, 1::2].set(jnp.cos(pos * div))
    return pe


def diarization_forward(src_list, tgt_list, ilens, prep, cfg):
    n_heads = cfg['n_heads']
    D = cfg['n_units']
    n_speakers = [t.shape[1] for t in tgt_list]
    S = max(n_speakers)
    B = len(src_list)

    # ---- encoder (MaskedTransformerEncoderModel, eval, has_mask=False) ----
    Tsrc = max(s.shape[0] for s in src_list)
    src_pad = jnp.stack([jnp.pad(s, ((0, Tsrc - s.shape[0]), (0, 0)),
                                 constant_values=-1.0) for s in src_list])
    Fdim = src_pad.shape[-1]
    x = encoder_input_proj(src_pad.reshape(B * Tsrc, Fdim),
                           prep['enc_w'], prep['enc_b'],
                           prep['enc_ln_g'], prep['enc_ln_b'])
    x = x.reshape(B, Tsrc, D)                                  # bf16
    for lp in prep['enc_layers']:
        x = transformer_layer(x, lp, n_heads, causal=False)

    # ---- slice to ilens, zero re-pad (vectorized mask) ----
    Tm = max(ilens)
    lens = jnp.asarray(ilens, jnp.int32)
    tmask = (jnp.arange(Tm)[None, :] < lens[:, None]).astype(x.dtype)[..., None]
    emb_pre = x[:, :Tm, :] * tmask                             # bf16 (B,Tm,D)

    # ---- Conv1d (im2col inside the kernel) + L2-norm + decoder-init proj ----
    pad = 9                                   # module hard-codes padding=9
    K = prep['conv_w'].shape[0]
    xp = jnp.pad(emb_pre, ((0, 0), (pad, pad), (0, 0)))
    Tout = Tm + 2 * pad - K + 1               # == Tm when conv_delay == 9
    emb, emb_proj = conv_l2_proj(xp, prep['conv_w'], prep['conv_b'],
                                 prep['convert_w_top'], Tout)   # f32, f32

    # ---- decoder init: convert(cat(emb, pos_enc)) = emb@W_top + (pe@W_bot + b)
    pe = positional_encoding(S, D)
    pe_proj = pe @ prep['convert_w_bot'] + prep['convert_b']    # (S, D), tiny
    init = emb_proj[:, :, None, :] + pe_proj[None, None, :, :]  # (B,T,S,D)

    # TODO(synk): TransformerEncoderFusionLayer is not defined in the reference
    # source; approximated as a standard post-LN encoder layer with causal
    # temporal self-attention applied independently per speaker slot.
    xdec = init.transpose(0, 2, 1, 3).reshape(B * S, Tout, D).astype(jnp.bfloat16)
    for lp in prep['dec_layers']:
        xdec = transformer_layer(xdec, lp, n_heads, causal=True,
                                 mask_delay=cfg['mask_delay'])
    attr = xdec.reshape(B, S, Tout, D)

    # ---- attractor L2-normalize fused with output scores ----
    attr_n, scores = attractor_norm_scores(attr, emb)          # (B,S,T,D),(B,S,T)

    # ---- embedding-consistency loss (cosine maps + MSE, accumulated grid) ----
    tgt_pad = jnp.stack([jnp.pad(t, ((0, Tout - t.shape[0]), (0, S - t.shape[1])))
                         for t in tgt_list])
    sq = consis_loss_sum(emb, tgt_pad)
    emb_consis_loss = sq[0, 0] / (B * Tout * Tout)

    # ---- ragged outputs (matches reference slicing) ----
    output_list = [scores[i, :n_speakers[i], :ilens[i]].T for i in range(B)]
    emb_list = [emb[i, :ilens[i]] for i in range(B)]
    attr_list = [jnp.transpose(attr_n[i, 1:n_speakers[i], :ilens[i]], (1, 0, 2))
                 for i in range(B)]
    return output_list, emb_consis_loss, emb_list, attr_list


# ----------------------------------------------------------------------------
# Deterministic parameter initialization (synthetic, no checkpoint)
# ----------------------------------------------------------------------------

def init_params(key, cfg):
    keys = iter(jax.random.split(key, 256))

    def u(shape, scale=0.1):
        return jax.random.uniform(next(keys), shape, jnp.float32, -scale, scale)

    D = cfg['n_units']
    Fdim = cfg['in_size']

    def layer_params(ff):
        return dict(
            wqkv=u((D, 3 * D)), bqkv=u((3 * D,), 0.01),
            wo=u((D, D)), bo=u((D,), 0.01),
            ln1_g=jnp.ones((D,), jnp.float32), ln1_b=jnp.zeros((D,), jnp.float32),
            ln2_g=jnp.ones((D,), jnp.float32), ln2_b=jnp.zeros((D,), jnp.float32),
            ff1_w=u((D, ff), 0.05), ff1_b=u((ff,), 0.01),
            ff2_w=u((ff, D), 0.05), ff2_b=u((D,), 0.01),
        )

    enc = dict(
        enc_w=u((Fdim, D)), enc_b=jnp.zeros((D,), jnp.float32),
        enc_ln_g=jnp.ones((D,), jnp.float32), enc_ln_b=jnp.zeros((D,), jnp.float32),
        # PyTorch TransformerEncoderLayer default dim_feedforward=2048
        layers=[layer_params(2048) for _ in range(cfg['enc_n_layers'])],
    )
    dec = dict(
        convert_w=u((2 * D, D)), convert_b=u((D,), 0.01),
        layers=[layer_params(cfg['dec_dim_feedforward'])
                for _ in range(cfg['dec_n_layers'])],
    )
    K = 2 * cfg['conv_delay'] + 1
    return dict(enc=enc, dec=dec, conv_w=u((K, D, D), 0.05), conv_b=u((D,), 0.01))


# ----------------------------------------------------------------------------

if __name__ == "__main__":
    cfg = dict(
        n_speakers=4, in_size=16, n_units=32, n_heads=2,
        enc_n_layers=1, dec_n_layers=1, dec_dim_feedforward=64,
        conv_delay=9, mask_delay=0,
    )
    key = jax.random.PRNGKey(0)
    kp, ks, kt = jax.random.split(key, 3)

    params = init_params(kp, cfg)
    prep = prepare_params(params, cfg)      # bf16 copies / scale folds, once

    ilens = [16, 12]
    nspk = [3, 4]
    src_list = [
        jax.random.normal(jax.random.fold_in(ks, i), (ilens[i], cfg['in_size']),
                          jnp.float32)
        for i in range(2)
    ]
    tgt_list = [
        (jax.random.uniform(jax.random.fold_in(kt, i), (ilens[i], nspk[i])) > 0.5
         ).astype(jnp.float32)
        for i in range(2)
    ]

    output, loss, emb, attractors = diarization_forward(
        src_list, tgt_list, ilens, prep, cfg)

    jax.block_until_ready(loss)
    for o in output:
        jax.block_until_ready(o)
    for e in emb:
        jax.block_until_ready(e)
    for a in attractors:
        jax.block_until_ready(a)

    print("KERNEL_OK")
</pallas_src>

<mosaic_0001>
module attributes {stable_mosaic.version = 11 : i64} {
  func.func @_enc_in_kernel(%arg0: i32, %arg1: memref<32x16xf32, #tpu.memory_space<vmem>>, %arg2: memref<16x32xbf16, #tpu.memory_space<vmem>>, %arg3: memref<1x32xf32, #tpu.memory_space<vmem>>, %arg4: memref<1x32xf32, #tpu.memory_space<vmem>>, %arg5: memref<1x32xf32, #tpu.memory_space<vmem>>, %arg6: memref<32x32xbf16, #tpu.memory_space<vmem>>) attributes {dimension_semantics = [#tpu.dimension_semantics<parallel>], iteration_bounds = array<i64: 1>, scalar_prefetch = 0 : i64, scratch_operands = 0 : i64, tpu.core_type = #tpu.core_type<tc>, window_params = [{transform_indices = @transform_0, window_bounds = array<i64: 32, 16>}, {pipeline_mode = #tpu.pipeline_mode<synchronous>, transform_indices = @transform_1, window_bounds = array<i64: 16, 32>}, {pipeline_mode = #tpu.pipeline_mode<synchronous>, transform_indices = @transform_2, window_bounds = array<i64: 1, 32>}, {pipeline_mode = #tpu.pipeline_mode<synchronous>, transform_indices = @transform_3, window_bounds = array<i64: 1, 32>}, {pipeline_mode = #tpu.pipeline_mode<synchronous>, transform_indices = @transform_4, window_bounds = array<i64: 1, 32>}, {transform_indices = @transform_5, window_bounds = array<i64: 32, 32>}]} {
    %c0 = arith.constant 0 : index
    %c0_0 = arith.constant 0 : index
    %0 = vector.load %arg1[%c0, %c0_0] : memref<32x16xf32, #tpu.memory_space<vmem>>, vector<32x16xf32>
    %1 = arith.truncf %0 : vector<32x16xf32> to vector<32x16xbf16>
    %c0_1 = arith.constant 0 : index
    %c0_2 = arith.constant 0 : index
    %2 = vector.load %arg2[%c0_1, %c0_2] : memref<16x32xbf16, #tpu.memory_space<vmem>>, vector<16x32xbf16>
    %cst = arith.constant dense<0.000000e+00> : vector<32x32xf32>
    %3 = tpu.matmul %1, %2, %cst {dimension_numbers = #tpu.dot_dimension_numbers<[1], [0], [0], [1], [0, 0, 1, 1], [], []>} : vector<32x16xbf16>, vector<16x32xbf16>, vector<32x32xf32> -> vector<32x32xf32>
    %c0_3 = arith.constant 0 : index
    %c0_4 = arith.constant 0 : index
    %4 = vector.load %arg3[%c0_3, %c0_4] : memref<1x32xf32, #tpu.memory_space<vmem>>, vector<1x32xf32>
    %5 = vector.broadcast %4 : vector<1x32xf32> to vector<32x32xf32>
    %6 = arith.addf %3, %5 : vector<32x32xf32>
    %cst_5 = arith.constant dense<0.000000e+00> : vector<32xf32>
    %7 = vector.multi_reduction <add>, %6, %cst_5 [1] : vector<32x32xf32> to vector<32xf32>
    %8 = vector.shape_cast %7 : vector<32xf32> to vector<32x1xf32>
    %cst_6 = arith.constant 3.200000e+01 : f32
    %9 = vector.broadcast %cst_6 : f32 to vector<32x1xf32>
    %10 = arith.divf %8, %9 : vector<32x1xf32>
    %11 = vector.broadcast %10 : vector<32x1xf32> to vector<32x32xf32>
    %12 = arith.subf %6, %11 : vector<32x32xf32>
    %13 = arith.mulf %12, %12 : vector<32x32xf32>
    %cst_7 = arith.constant dense<0.000000e+00> : vector<32xf32>
    %14 = vector.multi_reduction <add>, %13, %cst_7 [1] : vector<32x32xf32> to vector<32xf32>
    %15 = vector.shape_cast %14 : vector<32xf32> to vector<32x1xf32>
    %cst_8 = arith.constant 3.200000e+01 : f32
    %16 = vector.broadcast %cst_8 : f32 to vector<32x1xf32>
    %17 = arith.divf %15, %16 : vector<32x1xf32>
    %18 = vector.broadcast %10 : vector<32x1xf32> to vector<32x32xf32>
    %19 = arith.subf %6, %18 : vector<32x32xf32>
    %cst_9 = arith.constant 9.99999974E-6 : f32
    %20 = vector.broadcast %cst_9 : f32 to vector<32x1xf32>
    %21 = arith.addf %17, %20 : vector<32x1xf32>
    %22 = math.rsqrt %21 : vector<32x1xf32>
    %23 = vector.broadcast %22 : vector<32x1xf32> to vector<32x32xf32>
    %24 = arith.mulf %19, %23 : vector<32x32xf32>
    %c0_10 = arith.constant 0 : index
    %c0_11 = arith.constant 0 : index
    %25 = vector.load %arg4[%c0_10, %c0_11] : memref<1x32xf32, #tpu.memory_space<vmem>>, vector<1x32xf32>
    %26 = vector.broadcast %25 : vector<1x32xf32> to vector<32x32xf32>
    %27 = arith.mulf %24, %26 : vector<32x32xf32>
    %c0_12 = arith.constant 0 : index
    %c0_13 = arith.constant 0 : index
    %28 = vector.load %arg5[%c0_12, %c0_13] : memref<1x32xf32, #tpu.memory_space<vmem>>, vector<1x32xf32>
    %29 = vector.broadcast %28 : vector<1x32xf32> to vector<32x32xf32>
    %30 = arith.addf %27, %29 : vector<32x32xf32>
    %31 = arith.truncf %30 : vector<32x32xf32> to vector<32x32xbf16>
    %c0_14 = arith.constant 0 : index
    %c0_15 = arith.constant 0 : index
    %32 = vector.load %arg6[%c0_14, %c0_15] : memref<32x32xbf16, #tpu.memory_space<vmem>>, vector<32x32xbf16>
    tpu.vector_store %arg6[%c0_14, %c0_15], %31 {strides = array<i32>} : memref<32x32xbf16, #tpu.memory_space<vmem>>, vector<32x32xbf16>,
    return
  }
  func.func @transform_0(%arg0: i32) -> (i32, i32) {
    %c0_i32 = arith.constant 0 : i32
    %c0_i32_0 = arith.constant 0 : i32
    return %arg0, %c0_i32 : i32, i32
  }
  func.func @transform_1(%arg0: i32) -> (i32, i32) {
    %c0_i32 = arith.constant 0 : i32
    %c0_i32_0 = arith.constant 0 : i32
    %c0_i32_1 = arith.constant 0 : i32
    return %c0_i32, %c0_i32_0 : i32, i32
  }
  func.func @transform_2(%arg0: i32) -> (i32, i32) {
    %c0_i32 = arith.constant 0 : i32
    %c0_i32_0 = arith.constant 0 : i32
    %c0_i32_1 = arith.constant 0 : i32
    return %c0_i32, %c0_i32_0 : i32, i32
  }
  func.func @transform_3(%arg0: i32) -> (i32, i32) {
    %c0_i32 = arith.constant 0 : i32
    %c0_i32_0 = arith.constant 0 : i32
    %c0_i32_1 = arith.constant 0 : i32
    return %c0_i32, %c0_i32_0 : i32, i32
  }
  func.func @transform_4(%arg0: i32) -> (i32, i32) {
    %c0_i32 = arith.constant 0 : i32
    %c0_i32_0 = arith.constant 0 : i32
    %c0_i32_1 = arith.constant 0 : i32
    return %c0_i32, %c0_i32_0 : i32, i32
  }
  func.func @transform_5(%arg0: i32) -> (i32, i32) {
    %c0_i32 = arith.constant 0 : i32
    %c0_i32_0 = arith.constant 0 : i32
    return %arg0, %c0_i32 : i32, i32
  }
}

</mosaic_0001>

<llo_original>
// kernel: tpu_custom_call.1
$region0: #{tpu_custom_call.1}
  #allocation0 [shape = 'u32[]', space=smem, size = 0x4, offset = 0x4, fixed_abs, tag = 'smem constant byte address 0x4 - core index']
  #allocation1 [shape = 'u32[144,128]{1,0:T(1,128)}', space=vmem, size = 0x12000, scoped, tag = 'internal scratch']
  %s0 = inlined_call_operand.vmem [shape: f32[32,16], index: 0, kind: input, shape index: {}]
  %s1 = inlined_call_operand.vmem [shape: bf16[16,32], index: 1, kind: input, shape index: {}]
  %s2 = inlined_call_operand.vmem [shape: f32[1,32], index: 2, kind: input, shape index: {}]
  %s3 = inlined_call_operand.vmem [shape: f32[1,32], index: 3, kind: input, shape index: {}]
  %s4 = inlined_call_operand.vmem [shape: f32[1,32], index: 4, kind: input, shape index: {}]
  %s5 = inlined_call_operand.hbm [shape: bf16[32,32], index: 5, kind: output, shape index: {}]
  %s6 = sld [smem:[#allocation0]]
  $region30: #{tpu_custom_call.1} parent=0
    _
  %s8 = ssub.s32 1, %s6
  %s9 = scalar_select 0, %s8, %s6
  $region1: #{tpu_custom_call.1} parent=0
    #allocation2 [shape = 'u8[8192]{0}', space=vmem, size = 0x2000, scoped, tag = 'output window, operand 0, single buffered']
    #allocation3 [shape = 's32[1]{0}', space=sflag, size = 0x4, scoped, tag = 'scoped memory for tpu_custom_call.1']
    %10 = vsyncpa [#allocation3], 0
    // Predicated region
    $region2: #{tpu_custom_call.1} parent=1 // pred_check
      _
    $region3: #{tpu_custom_call.1} parent=1 // pred_check_branch
      %12 = sbr.rel (0) target = $region5
    $region4: #{tpu_custom_call.1} parent=1 // pred_region
      _
    $region5: #{tpu_custom_call.1} parent=1 // pred_fallthru
      _
    // Predicated region
    $region6: #{tpu_custom_call.1} parent=1 // pred_check
      _
    $region7: #{tpu_custom_call.1} parent=1 // pred_check_branch
      %14 = sbr.rel (0) target = $region9
    $region8: #{tpu_custom_call.1} parent=1 // pred_region
      _
    $region9: #{tpu_custom_call.1} parent=1 // pred_fallthru
      _
    // Predicated region
    $region10: #{tpu_custom_call.1} parent=1 // pred_check
      _
    $region11: #{tpu_custom_call.1} parent=1 // pred_check_branch
      %16 = sbr.rel (0) target = $region13
    $region12: #{tpu_custom_call.1} parent=1 // pred_region
      _
    $region13: #{tpu_custom_call.1} parent=1 // pred_fallthru
      _
    // Predicated region
    $region14: #{tpu_custom_call.1} parent=1 // pred_check
      _
    $region15: #{tpu_custom_call.1} parent=1 // pred_check_branch
      %18 = sbr.rel (0) target = $region17
    $region16: #{tpu_custom_call.1} parent=1 // pred_region
      _
    $region17: #{tpu_custom_call.1} parent=1 // pred_fallthru
      _
    // Predicated region
    $region18: #{tpu_custom_call.1} parent=1 // pred_check
      _
    $region19: #{tpu_custom_call.1} parent=1 // pred_check_branch
      %20 = sbr.rel (0) target = $region21
    $region20: #{tpu_custom_call.1} parent=1 // pred_region
      _
    $region21: #{tpu_custom_call.1} parent=1 // pred_fallthru
      _
    %v22 = vld [vmem:[%s0] sm:$0xff]
    %v23 = vld [vmem:[%s0 + $0x8] sm:$0xff]
    %v24 = vld [vmem:[%s0 + $0x10] sm:$0xff]
    %v25 = vld [vmem:[%s0 + $0x18] sm:$0xff]
    %v26 = vpack.c.bf16 %v23, %v22
    %v27 = vpack.c.bf16 %v25, %v24
    %v28 = vld [vmem:[%s1] sm:$0xf]
    %v29 = vld [vmem:[%s1 + $0x4] sm:$0xf]
    %v30 = vld [vmem:[%s2] sm:$0x1]
    %v32 = vlaneseq
    %v33 = vshrl.u32 %v32, 7
    %v34 = vsub.s32 0, %v33
    %v35 = vrot.slane %v30, %v34
    %v39 = vunpack.c.l.b16 %v28
    %v40 = vunpack.c.l.b16 %v29
    %v41 = vpack.c.b16 %v40, %v39
    %vm43 = vcmask 130048
    %v45 = vsel %vm43, %v26, 0
    %v48 = vsel %vm43, %v27, 0
    %50 = vmatprep.subr.bf16.mxu0 0
    %51 = vmatpush1.bf16.msra.mxu0 %v41
    %52 = vmatprep.subr.bf16.mxu0 0
    %53 = vmatpush1.bf16.msra.mxu0 0
    %54 = vmatprep.subr.bf16.mxu0 0
    %55 = vmatpush1.bf16.msra.mxu0 0
    %56 = vmatprep.subr.bf16.mxu0 0
    %57 = vmatpush1.bf16.msra.mxu0 0
    %58 = vmatprep.subr.bf16.mxu0 0
    %59 = vmatpush1.bf16.msra.mxu0 0
    %60 = vmatprep.subr.bf16.mxu0 0
    %61 = vmatpush1.bf16.msra.mxu0 0
    %62 = vmatprep.subr.bf16.mxu0 0
    %63 = vmatpush1.bf16.msra.mxu0 0
    %64 = vmatprep.subr.bf16.mxu0 0
    %65 = vmatpush1.bf16.msra.mxu0 0
    %66 = vmatprep.subr.bf16.mxu0 0
    %67 = vmatpush1.bf16.msra.mxu0 0
    %68 = vmatprep.subr.bf16.mxu0 0
    %69 = vmatpush1.bf16.msra.mxu0 0
    %70 = vmatprep.subr.bf16.mxu0 0
    %71 = vmatpush1.bf16.msra.mxu0 0
    %72 = vmatprep.subr.bf16.mxu0 0
    %73 = vmatpush1.bf16.msra.mxu0 0
    %74 = vmatprep.subr.bf16.mxu0 0
    %75 = vmatpush1.bf16.msra.mxu0 0
    %76 = vmatprep.subr.bf16.mxu0 0
    %77 = vmatpush1.bf16.msra.mxu0 0
    %78 = vmatprep.subr.bf16.mxu0 0
    %79 = vmatpush1.bf16.msra.mxu0 0
    %80 = vmatprep.subr.bf16.mxu0 0
    %81 = vmatpush1.bf16.msra.mxu0 0
    %82 = vmatprep.mubr.bf16.mxu0 0
    %83 = vmatmul.mubr.bf16.gmra.mrb[0].mxu0 %v45
    %v84 = vpop.f32.mrb[0].mxu0
    %v85 = vadd.f32 %v35, %v84
    %v86 = vpop.f32.mrb[0].mxu0
    %v87 = vpop.f32.mrb[0].mxu0
    %v88 = vadd.f32 %v35, %v87
    %v89 = vpop.f32.mrb[0].mxu0
    %90 = vmatprep.mubr.bf16.mxu0 0
    %91 = vmatmul.mubr.bf16.gmra.mrb[0].mxu0 %v48
    %v92 = vpop.f32.mrb[0].mxu0
    %v93 = vadd.f32 %v35, %v92
    %v94 = vpop.f32.mrb[0].mxu0
    %v95 = vpop.f32.mrb[0].mxu0
    %v96 = vadd.f32 %v35, %v95
    %v97 = vpop.f32.mrb[0].mxu0
    %98 = vdwg.mxu0
    %vm99 = vcmask 261120
    %v100 = vsel %vm99, %v85, 0.0
    %101 = vadd.xlane.f32.xlu0 %v100
    %v102 = vpop.xlane.xlu0 %101
    %v103 = vsel %vm99, %v88, 0.0
    %104 = vadd.xlane.f32.xlu0 %v103
    %v105 = vpop.xlane.xlu0 %104
    %v106 = vsel %vm99, %v93, 0.0
    %107 = vadd.xlane.f32.xlu0 %v106
    %v108 = vpop.xlane.xlu0 %107
    %v109 = vsel %vm99, %v96, 0.0
    %110 = vadd.xlane.f32.xlu0 %v109
    %v111 = vpop.xlane.xlu0 %110
    %v112 = vrcp.pop 32.0
    %v113 = vmul.f32 %v102, %v112
    %v114 = vmul.f32 %v105, %v112
    %v115 = vmul.f32 %v108, %v112
    %v116 = vmul.f32 %v111, %v112
    %v117 = vsub.f32 %v85, %v113
    %v118 = vsub.f32 %v88, %v114
    %v119 = vsub.f32 %v93, %v115
    %v120 = vsub.f32 %v96, %v116
    %v121 = vmul.f32 %v117, %v117
    %v122 = vmul.f32 %v118, %v118
    %v123 = vmul.f32 %v119, %v119
    %v124 = vmul.f32 %v120, %v120
    %v125 = vsel %vm99, %v121, 0.0
    %126 = vadd.xlane.f32.xlu0 %v125
    %v127 = vpop.xlane.xlu0 %126
    %v128 = vsel %vm99, %v122, 0.0
    %129 = vadd.xlane.f32.xlu0 %v128
    %v130 = vpop.xlane.xlu0 %129
    %v131 = vsel %vm99, %v123, 0.0
    %132 = vadd.xlane.f32.xlu0 %v131
    %v133 = vpop.xlane.xlu0 %132
    %v134 = vsel %vm99, %v124, 0.0
    %135 = vadd.xlane.f32.xlu0 %v134
    %v136 = vpop.xlane.xlu0 %135
    %v137 = vmul.f32 %v127, %v112
    %v138 = vmul.f32 %v130, %v112
    %v139 = vmul.f32 %v133, %v112
    %v140 = vmul.f32 %v136, %v112
    %v141 = vadd.f32 %v137, 1e-05
    %v142 = vadd.f32 %v138, 1e-05
    %v143 = vadd.f32 %v139, 1e-05
    %v144 = vadd.f32 %v140, 1e-05
    %v145 = vrsqrt.pop %v141
    %v146 = vrsqrt.pop %v142
    %v147 = vrsqrt.pop %v143
    %v148 = vrsqrt.pop %v144
    %v149 = vmul.f32 %v117, %v145
    %v150 = vmul.f32 %v118, %v146
    %v151 = vmul.f32 %v119, %v147
    %v152 = vmul.f32 %v120, %v148
    %v153 = vld [vmem:[%s3] sm:$0x1]
    %v155 = vlaneseq
    %v156 = vshrl.u32 %v155, 7
    %v157 = vsub.s32 0, %v156
    %v158 = vrot.slane %v153, %v157
    %v160 = vmul.f32 %v149, %v158
    %v161 = vmul.f32 %v150, %v158
    %v162 = vmul.f32 %v151, %v158
    %v163 = vmul.f32 %v152, %v158
    %v164 = vld [vmem:[%s4] sm:$0x1]
    %v166 = vlaneseq
    %v167 = vshrl.u32 %v166, 7
    %v168 = vsub.s32 0, %v167
    %v169 = vrot.slane %v164, %v168
    %v171 = vadd.f32 %v160, %v169
    %v172 = vadd.f32 %v161, %v169
    %v173 = vadd.f32 %v162, %v169
    %v174 = vadd.f32 %v163, %v169
    %v175 = vpack.c.bf16 %v172, %v171
    %v176 = vpack.c.bf16 %v174, %v173
    %v179 = vunpack.c.l.b16 %v175
    %v180 = vunpack.c.h.b16 %v175
    %v181 = vunpack.c.l.b16 %v176
    %v182 = vunpack.c.h.b16 %v176
    %v183 = vpack.c.b16 %v179, %v179
    %v184 = vpack.c.b16 %v180, %v180
    %v185 = vpack.c.b16 %v181, %v181
    %v186 = vpack.c.b16 %v182, %v182
    %vm191 = vcmask 257024
    %192 = vst.msk [vmem:[#allocation2] sm:$0xf] %vm191, %v183
    %193 = vst.msk [vmem:[#allocation2 + $0x4] sm:$0xf] %vm191, %v184
    %194 = vst.msk [vmem:[#allocation2 + $0x8] sm:$0xf] %vm191, %v185
    %195 = vst.msk [vmem:[#allocation2 + $0xc] sm:$0xf] %vm191, %v186
    // Predicated region
    $region22: #{tpu_custom_call.1} parent=1 // pred_check
      _
    $region23: #{tpu_custom_call.1} parent=1 // pred_check_branch
      %197 = sbr.rel (0) target = $region25
    $region24: #{tpu_custom_call.1} parent=1 // pred_region
      %s199 = ssub.s32 256, 256
      %200 = vsyncadd [#allocation3], %s199
      %s201 = sshll.u32 [#allocation2], 4
      %s202 = int_to_ptr.vmem [resolvable:$true] %s201
      %207 = dma.vmem_to_hbm [thread:$0]  %s202, 256, %s5, [#allocation3], 64, 64, 4
    $region25: #{tpu_custom_call.1} parent=1 // pred_fallthru
      _
    // Predicated region
    $region26: #{tpu_custom_call.1} parent=1 // pred_check
      _
    $region27: #{tpu_custom_call.1} parent=1 // pred_check_branch
      %209 = sbr.rel (0) target = $region29
    $region28: #{tpu_custom_call.1} parent=1 // pred_region
      %210 = dma.done [#allocation3], 256
    $region29: #{tpu_custom_call.1} parent=1 // pred_fallthru
      _
    %211 = vsyncpa [#allocation3], 1

</llo_original>
